<compile_context>
chip_gen: v6e
topology: v6e:2x2x1
jax: 0.10.0
libtpu: 0.0.40
codegen_flags: <defaults>
</compile_context>

<pallas_src>
import jax
import jax.numpy as jnp
from jax.experimental import pallas as pl
from jax.experimental.pallas import tpu as pltpu

LANES = 128
SUBLANES = 8
MAX_TILE_ROWS = 8192                       # (8192, 128) f32 block = 4 MiB
MIN_TILE_ROWS = 256
INPUT_VMEM_BUDGET = 24 * 1024 * 1024       # budget for double-buffered input blocks
VMEM_LIMIT_BYTES = 48 * 1024 * 1024


def _cdiv(a, b):
    return -(-a // b)


# ---------------------------------------------------------------------------
# In-kernel helpers
# ---------------------------------------------------------------------------

def _fold8(x, tile):
    """Fold a (tile, 128) f32 value into an (8, 128) partial sum (pure VPU adds)."""
    if tile == SUBLANES:
        return x
    return x.reshape(tile // SUBLANES, SUBLANES, LANES).sum(axis=0)


def _mask_rows(x, i, tile, rows):
    """Zero rows past the true row count (garbage in a ragged trailing block)."""
    row = i * tile + jax.lax.broadcasted_iota(jnp.int32, x.shape, 0)
    return jnp.where(row < rows, x, 0.0)


def _guarded(i, rows, tile, n_blocks, total_blocks, body):
    """Run body(masked) only for in-range blocks; mask only the ragged last one."""
    ragged = (rows % tile) != 0
    if not ragged:
        if n_blocks == total_blocks:
            body(False)
        else:
            @pl.when(i < n_blocks)
            def _():
                body(False)
    else:
        @pl.when(i < n_blocks - 1)
        def _():
            body(False)

        @pl.when(i == n_blocks - 1)
        def _():
            body(True)


def _make_elastic_kernel(sse_meta, w_metas, total_blocks):
    """Fused SSE(output,target) + sum(w^2) + sum(|w|) over all weight slabs."""
    sse_rows, sse_tile, sse_blocks = sse_meta
    nw = len(w_metas)

    def kernel(*refs):
        out_ref, tgt_ref = refs[0], refs[1]
        w_refs = refs[2:2 + nw]
        sse_o, sq_o, abs_o = refs[2 + nw:5 + nw]
        acc_sse, acc_sq, acc_abs = refs[5 + nw:8 + nw]
        i = pl.program_id(0)

        @pl.when(i == 0)
        def _():
            acc_sse[...] = jnp.zeros_like(acc_sse)
            acc_sq[...] = jnp.zeros_like(acc_sq)
            acc_abs[...] = jnp.zeros_like(acc_abs)

        def sse_body(masked):
            a = out_ref[...].astype(jnp.float32)
            b = tgt_ref[...].astype(jnp.float32)
            sq = (a - b) * (a - b)
            if masked:
                sq = _mask_rows(sq, i, sse_tile, sse_rows)
            acc_sse[...] += _fold8(sq, sse_tile)

        _guarded(i, sse_rows, sse_tile, sse_blocks, total_blocks, sse_body)

        for w_ref, (w_rows, w_tile, w_blocks) in zip(w_refs, w_metas):
            def w_body(masked, w_ref=w_ref, w_tile=w_tile, w_rows=w_rows):
                w = w_ref[...].astype(jnp.float32)
                if masked:
                    w = _mask_rows(w, i, w_tile, w_rows)
                acc_sq[...] += _fold8(w * w, w_tile)
                acc_abs[...] += _fold8(jnp.abs(w), w_tile)

            _guarded(i, w_rows, w_tile, w_blocks, total_blocks, w_body)

        @pl.when(i == total_blocks - 1)
        def _():
            sse_o[...] = jnp.sum(acc_sse[...], keepdims=True)
            sq_o[...] = jnp.sum(acc_sq[...], keepdims=True)
            abs_o[...] = jnp.sum(acc_abs[...], keepdims=True)

    return kernel


# ---------------------------------------------------------------------------
# Host-side wrappers
# ---------------------------------------------------------------------------

def _to_rows128(x):
    """Flatten row-major into a lane-dense (rows, 128) slab.

    Small slabs (<= MAX_TILE_ROWS rows) are additionally padded to a multiple
    of 8 rows so in-kernel vreg folding is always legal.  Zero padding is
    sum-preserving for SSE / sum(w^2) / sum(|w|).
    """
    flat = jnp.ravel(x)
    n = flat.shape[0]
    rows = _cdiv(n, LANES)
    if rows <= MAX_TILE_ROWS:
        rows = _cdiv(rows, SUBLANES) * SUBLANES
    total = rows * LANES
    if total != n:
        # TODO(synk): for huge non-128-aligned arrays this pad is a full copy;
        # could be avoided by splitting off the small tail as its own slab.
        flat = jnp.pad(flat, (0, total - n))
    return flat.reshape(rows, LANES)


def _choose_tiles(rows_list):
    """Per-slab row-tile (multiple of 8) under a double-buffered VMEM budget."""
    tiles = [min(r, MAX_TILE_ROWS) for r in rows_list]
    bytes_per_row = 2 * LANES * 4           # double-buffered f32 rows
    budget_rows = INPUT_VMEM_BUDGET // bytes_per_row
    while sum(tiles) > budget_rows:
        j = max(range(len(tiles)), key=lambda k: tiles[k])
        if tiles[j] <= MIN_TILE_ROWS:
            break
        tiles[j] = max(MIN_TILE_ROWS, ((tiles[j] // 2) // SUBLANES) * SUBLANES)
    return tiles


def pallas_elastic_terms(out2d, tgt2d, w2ds):
    """Returns (sum((o-t)^2), sum(w^2), sum(|w|)) from one fused kernel launch."""
    rows_list = [out2d.shape[0]] + [w.shape[0] for w in w2ds]
    tiles = _choose_tiles(rows_list)

    sse_rows, sse_tile = rows_list[0], tiles[0]
    sse_blocks = _cdiv(sse_rows, sse_tile)
    w_metas = [(r, t, _cdiv(r, t)) for r, t in zip(rows_list[1:], tiles[1:])]
    total_blocks = max([sse_blocks] + [m[2] for m in w_metas])

    def make_spec(tile, n_blocks):
        if n_blocks == 1:
            return pl.BlockSpec((tile, LANES), lambda i: (0, 0))
        last = n_blocks - 1
        # Clamp past the slab's range: same block index => no extra DMA.
        return pl.BlockSpec((tile, LANES),
                            lambda i, _last=last: (jnp.minimum(i, _last), 0))

    in_specs = [make_spec(sse_tile, sse_blocks), make_spec(sse_tile, sse_blocks)]
    in_specs += [make_spec(t, nb) for (_, t, nb) in w_metas]

    out_shape = tuple(jax.ShapeDtypeStruct((1, 1), jnp.float32) for _ in range(3))
    out_specs = tuple(pl.BlockSpec((1, 1), lambda i: (0, 0)) for _ in range(3))
    scratch_shapes = [pltpu.VMEM((SUBLANES, LANES), jnp.float32) for _ in range(3)]

    kernel = _make_elastic_kernel((sse_rows, sse_tile, sse_blocks), w_metas,
                                  total_blocks)

    sse, sumsq, sumabs = pl.pallas_call(
        kernel,
        out_shape=out_shape,
        grid_spec=pltpu.PrefetchScalarGridSpec(
            num_scalar_prefetch=0,
            grid=(total_blocks,),
            in_specs=in_specs,
            out_specs=out_specs,
            scratch_shapes=scratch_shapes,
        ),
        compiler_params=pltpu.CompilerParams(
            dimension_semantics=("arbitrary",),   # reduction axis
            vmem_limit_bytes=VMEM_LIMIT_BYTES,
        ),
    )(out2d, tgt2d, *w2ds)
    return sse[0, 0], sumsq[0, 0], sumabs[0, 0]


# ---------------------------------------------------------------------------
# ElasticNet forward
# ---------------------------------------------------------------------------

def elastic_net_forward(output, target, params, alpha=0.0005, beta=0.0005):
    # vectorize_parameters(): only params with ndim > 1 enter the regularizer.
    # Each weight is passed as its own slab (no HBM concatenate of the vector).
    weights = [p for p in params if p.ndim > 1]
    out2d = _to_rows128(output)
    tgt2d = _to_rows128(target)
    w2ds = [_to_rows128(w) for w in weights]

    sse, sumsq, sumabs = pallas_elastic_terms(out2d, tgt2d, w2ds)

    loss_value = sse / jnp.asarray(output.size, jnp.float32)      # MSE, mean reduction
    alpha = jnp.asarray(alpha, jnp.float32)
    beta = jnp.asarray(beta, jnp.float32)
    reg_value = alpha * jnp.sqrt(sumsq) + beta * sumabs
    return loss_value + reg_value


if __name__ == "__main__":
    key = jax.random.PRNGKey(0)
    k_out, k_tgt, k_w1, k_w2, k_w3, k_b1, k_b2 = jax.random.split(key, 7)

    # "output" / "target" for the loss function (NCHW-shaped activations).
    output = jax.random.normal(k_out, (2, 4, 16, 16), dtype=jnp.float32)
    target = jax.random.normal(k_tgt, (2, 4, 16, 16), dtype=jnp.float32)

    # Deterministic synthetic "network" parameters (conv + conv + linear + biases).
    # Only the >1-dim tensors enter the regularizer, matching vectorize_parameters().
    params = [
        0.1 * jax.random.normal(k_w1, (4, 3, 3, 3), dtype=jnp.float32),   # conv1 weight
        0.1 * jax.random.normal(k_w2, (8, 4, 3, 3), dtype=jnp.float32),   # conv2 weight
        0.1 * jax.random.normal(k_w3, (10, 32), dtype=jnp.float32),       # fc weight
        0.1 * jax.random.normal(k_b1, (4,), dtype=jnp.float32),           # conv1 bias (skipped)
        0.1 * jax.random.normal(k_b2, (10,), dtype=jnp.float32),          # fc bias (skipped)
    ]

    alpha = 0.0005
    beta = 0.0005
    result = elastic_net_forward(output, target, params, alpha, beta)
    result = jax.block_until_ready(result)

    # Pure-JAX reference check.
    ref_loss = jnp.mean((output - target) ** 2)
    w_vec = jnp.concatenate([jnp.ravel(p) for p in params if p.ndim > 1])
    ref_reg = alpha * jnp.linalg.norm(w_vec) + beta * jnp.sum(jnp.abs(w_vec))
    ref = ref_loss + ref_reg
    assert jnp.allclose(result, ref, rtol=1e-5, atol=1e-5), (result, ref)

    print("KERNEL_OK")
</pallas_src>

<mosaic_0001>
module attributes {stable_mosaic.version = 11 : i64} {
  func.func @kernel(%arg0: i32, %arg1: memref<16x128xf32, #tpu.memory_space<vmem>>, %arg2: memref<16x128xf32, #tpu.memory_space<vmem>>, %arg3: memref<8x128xf32, #tpu.memory_space<vmem>>, %arg4: memref<8x128xf32, #tpu.memory_space<vmem>>, %arg5: memref<8x128xf32, #tpu.memory_space<vmem>>, %arg6: memref<1x1xf32, #tpu.memory_space<vmem>>, %arg7: memref<1x1xf32, #tpu.memory_space<vmem>>, %arg8: memref<1x1xf32, #tpu.memory_space<vmem>>, %arg9: memref<8x128xf32, #tpu.memory_space<vmem>>, %arg10: memref<8x128xf32, #tpu.memory_space<vmem>>, %arg11: memref<8x128xf32, #tpu.memory_space<vmem>>) attributes {dimension_semantics = [#tpu.dimension_semantics<arbitrary>], iteration_bounds = array<i64: 1>, scalar_prefetch = 0 : i64, scratch_operands = 3 : i64, tpu.core_type = #tpu.core_type<tc>, window_params = [{pipeline_mode = #tpu.pipeline_mode<synchronous>, transform_indices = @transform_0, window_bounds = array<i64: 16, 128>}, {pipeline_mode = #tpu.pipeline_mode<synchronous>, transform_indices = @transform_1, window_bounds = array<i64: 16, 128>}, {pipeline_mode = #tpu.pipeline_mode<synchronous>, transform_indices = @transform_2, window_bounds = array<i64: 8, 128>}, {pipeline_mode = #tpu.pipeline_mode<synchronous>, transform_indices = @transform_3, window_bounds = array<i64: 8, 128>}, {pipeline_mode = #tpu.pipeline_mode<synchronous>, transform_indices = @transform_4, window_bounds = array<i64: 8, 128>}, {pipeline_mode = #tpu.pipeline_mode<synchronous>, transform_indices = @transform_5, window_bounds = array<i64: 1, 1>}, {pipeline_mode = #tpu.pipeline_mode<synchronous>, transform_indices = @transform_6, window_bounds = array<i64: 1, 1>}, {pipeline_mode = #tpu.pipeline_mode<synchronous>, transform_indices = @transform_7, window_bounds = array<i64: 1, 1>}]} {
    %c0_i32 = arith.constant 0 : i32
    %0 = arith.cmpi eq, %arg0, %c0_i32 : i32
    %1 = arith.extui %0 : i1 to i32
    %c0_i32_0 = arith.constant 0 : i32
    %2 = arith.cmpi ne, %1, %c0_i32_0 : i32
    scf.if %2 {
      %cst_40 = arith.constant 0.000000e+00 : f32
      %43 = vector.broadcast %cst_40 : f32 to vector<8x128xf32>
      %c0_41 = arith.constant 0 : index
      %c0_42 = arith.constant 0 : index
      %44 = vector.load %arg9[%c0_41, %c0_42] : memref<8x128xf32, #tpu.memory_space<vmem>>, vector<8x128xf32>
      tpu.vector_store %arg9[%c0_41, %c0_42], %43 {strides = array<i32>} : memref<8x128xf32, #tpu.memory_space<vmem>>, vector<8x128xf32>,
      %cst_43 = arith.constant 0.000000e+00 : f32
      %45 = vector.broadcast %cst_43 : f32 to vector<8x128xf32>
      %c0_44 = arith.constant 0 : index
      %c0_45 = arith.constant 0 : index
      %46 = vector.load %arg10[%c0_44, %c0_45] : memref<8x128xf32, #tpu.memory_space<vmem>>, vector<8x128xf32>
      tpu.vector_store %arg10[%c0_44, %c0_45], %45 {strides = array<i32>} : memref<8x128xf32, #tpu.memory_space<vmem>>, vector<8x128xf32>,
      %cst_46 = arith.constant 0.000000e+00 : f32
      %47 = vector.broadcast %cst_46 : f32 to vector<8x128xf32>
      %c0_47 = arith.constant 0 : index
      %c0_48 = arith.constant 0 : index
      %48 = vector.load %arg11[%c0_47, %c0_48] : memref<8x128xf32, #tpu.memory_space<vmem>>, vector<8x128xf32>
      tpu.vector_store %arg11[%c0_47, %c0_48], %47 {strides = array<i32>} : memref<8x128xf32, #tpu.memory_space<vmem>>, vector<8x128xf32>,
    } else {
    }
    %c0 = arith.constant 0 : index
    %c0_1 = arith.constant 0 : index
    %3 = vector.load %arg1[%c0, %c0_1] : memref<16x128xf32, #tpu.memory_space<vmem>>, vector<16x128xf32>
    %c0_2 = arith.constant 0 : index
    %c0_3 = arith.constant 0 : index
    %4 = vector.load %arg2[%c0_2, %c0_3] : memref<16x128xf32, #tpu.memory_space<vmem>>, vector<16x128xf32>
    %5 = arith.subf %3, %4 : vector<16x128xf32>
    %6 = arith.subf %3, %4 : vector<16x128xf32>
    %7 = arith.mulf %5, %6 : vector<16x128xf32>
    %c0_4 = arith.constant 0 : index
    %c0_5 = arith.constant 0 : index
    %8 = vector.load %arg9[%c0_4, %c0_5] : memref<8x128xf32, #tpu.memory_space<vmem>>, vector<8x128xf32>
    %9 = vector.shape_cast %7 : vector<16x128xf32> to vector<2x8x128xf32>
    %cst = arith.constant dense<0.000000e+00> : vector<8x128xf32>
    %10 = vector.multi_reduction <add>, %9, %cst [0] : vector<2x8x128xf32> to vector<8x128xf32>
    %11 = arith.addf %8, %10 : vector<8x128xf32>
    %c0_6 = arith.constant 0 : index
    %c0_7 = arith.constant 0 : index
    %12 = vector.load %arg9[%c0_6, %c0_7] : memref<8x128xf32, #tpu.memory_space<vmem>>, vector<8x128xf32>
    tpu.vector_store %arg9[%c0_6, %c0_7], %11 {strides = array<i32>} : memref<8x128xf32, #tpu.memory_space<vmem>>, vector<8x128xf32>,
    %c0_8 = arith.constant 0 : index
    %c0_9 = arith.constant 0 : index
    %13 = vector.load %arg3[%c0_8, %c0_9] : memref<8x128xf32, #tpu.memory_space<vmem>>, vector<8x128xf32>
    %c0_10 = arith.constant 0 : index
    %c0_11 = arith.constant 0 : index
    %14 = vector.load %arg10[%c0_10, %c0_11] : memref<8x128xf32, #tpu.memory_space<vmem>>, vector<8x128xf32>
    %15 = arith.mulf %13, %13 : vector<8x128xf32>
    %16 = arith.addf %14, %15 : vector<8x128xf32>
    %c0_12 = arith.constant 0 : index
    %c0_13 = arith.constant 0 : index
    %17 = vector.load %arg10[%c0_12, %c0_13] : memref<8x128xf32, #tpu.memory_space<vmem>>, vector<8x128xf32>
    tpu.vector_store %arg10[%c0_12, %c0_13], %16 {strides = array<i32>} : memref<8x128xf32, #tpu.memory_space<vmem>>, vector<8x128xf32>,
    %c0_14 = arith.constant 0 : index
    %c0_15 = arith.constant 0 : index
    %18 = vector.load %arg11[%c0_14, %c0_15] : memref<8x128xf32, #tpu.memory_space<vmem>>, vector<8x128xf32>
    %19 = math.absf %13 : vector<8x128xf32>
    %20 = arith.addf %18, %19 : vector<8x128xf32>
    %c0_16 = arith.constant 0 : index
    %c0_17 = arith.constant 0 : index
    %21 = vector.load %arg11[%c0_16, %c0_17] : memref<8x128xf32, #tpu.memory_space<vmem>>, vector<8x128xf32>
    tpu.vector_store %arg11[%c0_16, %c0_17], %20 {strides = array<i32>} : memref<8x128xf32, #tpu.memory_space<vmem>>, vector<8x128xf32>,
    %c0_18 = arith.constant 0 : index
    %c0_19 = arith.constant 0 : index
    %22 = vector.load %arg4[%c0_18, %c0_19] : memref<8x128xf32, #tpu.memory_space<vmem>>, vector<8x128xf32>
    %c0_20 = arith.constant 0 : index
    %c0_21 = arith.constant 0 : index
    %23 = vector.load %arg10[%c0_20, %c0_21] : memref<8x128xf32, #tpu.memory_space<vmem>>, vector<8x128xf32>
    %24 = arith.mulf %22, %22 : vector<8x128xf32>
    %25 = arith.addf %23, %24 : vector<8x128xf32>
    %c0_22 = arith.constant 0 : index
    %c0_23 = arith.constant 0 : index
    %26 = vector.load %arg10[%c0_22, %c0_23] : memref<8x128xf32, #tpu.memory_space<vmem>>, vector<8x128xf32>
    tpu.vector_store %arg10[%c0_22, %c0_23], %25 {strides = array<i32>} : memref<8x128xf32, #tpu.memory_space<vmem>>, vector<8x128xf32>,
    %c0_24 = arith.constant 0 : index
    %c0_25 = arith.constant 0 : index
    %27 = vector.load %arg11[%c0_24, %c0_25] : memref<8x128xf32, #tpu.memory_space<vmem>>, vector<8x128xf32>
    %28 = math.absf %22 : vector<8x128xf32>
    %29 = arith.addf %27, %28 : vector<8x128xf32>
    %c0_26 = arith.constant 0 : index
    %c0_27 = arith.constant 0 : index
    %30 = vector.load %arg11[%c0_26, %c0_27] : memref<8x128xf32, #tpu.memory_space<vmem>>, vector<8x128xf32>
    tpu.vector_store %arg11[%c0_26, %c0_27], %29 {strides = array<i32>} : memref<8x128xf32, #tpu.memory_space<vmem>>, vector<8x128xf32>,
    %c0_28 = arith.constant 0 : index
    %c0_29 = arith.constant 0 : index
    %31 = vector.load %arg5[%c0_28, %c0_29] : memref<8x128xf32, #tpu.memory_space<vmem>>, vector<8x128xf32>
    %c0_30 = arith.constant 0 : index
    %c0_31 = arith.constant 0 : index
    %32 = vector.load %arg10[%c0_30, %c0_31] : memref<8x128xf32, #tpu.memory_space<vmem>>, vector<8x128xf32>
    %33 = arith.mulf %31, %31 : vector<8x128xf32>
    %34 = arith.addf %32, %33 : vector<8x128xf32>
    %c0_32 = arith.constant 0 : index
    %c0_33 = arith.constant 0 : index
    %35 = vector.load %arg10[%c0_32, %c0_33] : memref<8x128xf32, #tpu.memory_space<vmem>>, vector<8x128xf32>
    tpu.vector_store %arg10[%c0_32, %c0_33], %34 {strides = array<i32>} : memref<8x128xf32, #tpu.memory_space<vmem>>, vector<8x128xf32>,
    %c0_34 = arith.constant 0 : index
    %c0_35 = arith.constant 0 : index
    %36 = vector.load %arg11[%c0_34, %c0_35] : memref<8x128xf32, #tpu.memory_space<vmem>>, vector<8x128xf32>
    %37 = math.absf %31 : vector<8x128xf32>
    %38 = arith.addf %36, %37 : vector<8x128xf32>
    %c0_36 = arith.constant 0 : index
    %c0_37 = arith.constant 0 : index
    %39 = vector.load %arg11[%c0_36, %c0_37] : memref<8x128xf32, #tpu.memory_space<vmem>>, vector<8x128xf32>
    tpu.vector_store %arg11[%c0_36, %c0_37], %38 {strides = array<i32>} : memref<8x128xf32, #tpu.memory_space<vmem>>, vector<8x128xf32>,
    %c0_i32_38 = arith.constant 0 : i32
    %40 = arith.cmpi eq, %arg0, %c0_i32_38 : i32
    %41 = arith.extui %40 : i1 to i32
    %c0_i32_39 = arith.constant 0 : i32
    %42 = arith.cmpi ne, %41, %c0_i32_39 : i32
    scf.if %42 {
      %c0_40 = arith.constant 0 : index
      %c0_41 = arith.constant 0 : index
      %43 = vector.load %arg9[%c0_40, %c0_41] : memref<8x128xf32, #tpu.memory_space<vmem>>, vector<8x128xf32>
      %44 = vector.shape_cast %43 : vector<8x128xf32> to vector<1x8x128xf32>
      %cst_42 = arith.constant dense<0.000000e+00> : vector<1xf32>
      %45 = vector.multi_reduction <add>, %44, %cst_42 [1, 2] : vector<1x8x128xf32> to vector<1xf32>
      %46 = vector.shape_cast %45 : vector<1xf32> to vector<1x1x1xf32>
      %47 = vector.extract %46[0, 0, 0] : f32 from vector<1x1x1xf32>
      %48 = vector.broadcast %47 : f32 to vector<1x1xf32>
      %c0_43 = arith.constant 0 : index
      %c0_44 = arith.constant 0 : index
      %49 = vector.load %arg6[%c0_43, %c0_44] : memref<1x1xf32, #tpu.memory_space<vmem>>, vector<1x1xf32>
      tpu.vector_store %arg6[%c0_43, %c0_44], %48 {strides = array<i32>} : memref<1x1xf32, #tpu.memory_space<vmem>>, vector<1x1xf32>,
      %c0_45 = arith.constant 0 : index
      %c0_46 = arith.constant 0 : index
      %50 = vector.load %arg10[%c0_45, %c0_46] : memref<8x128xf32, #tpu.memory_space<vmem>>, vector<8x128xf32>
      %51 = vector.shape_cast %50 : vector<8x128xf32> to vector<1x8x128xf32>
      %cst_47 = arith.constant dense<0.000000e+00> : vector<1xf32>
      %52 = vector.multi_reduction <add>, %51, %cst_47 [1, 2] : vector<1x8x128xf32> to vector<1xf32>
      %53 = vector.shape_cast %52 : vector<1xf32> to vector<1x1x1xf32>
      %54 = vector.extract %53[0, 0, 0] : f32 from vector<1x1x1xf32>
      %55 = vector.broadcast %54 : f32 to vector<1x1xf32>
      %c0_48 = arith.constant 0 : index
      %c0_49 = arith.constant 0 : index
      %56 = vector.load %arg7[%c0_48, %c0_49] : memref<1x1xf32, #tpu.memory_space<vmem>>, vector<1x1xf32>
      tpu.vector_store %arg7[%c0_48, %c0_49], %55 {strides = array<i32>} : memref<1x1xf32, #tpu.memory_space<vmem>>, vector<1x1xf32>,
      %c0_50 = arith.constant 0 : index
      %c0_51 = arith.constant 0 : index
      %57 = vector.load %arg11[%c0_50, %c0_51] : memref<8x128xf32, #tpu.memory_space<vmem>>, vector<8x128xf32>
      %58 = vector.shape_cast %57 : vector<8x128xf32> to vector<1x8x128xf32>
      %cst_52 = arith.constant dense<0.000000e+00> : vector<1xf32>
      %59 = vector.multi_reduction <add>, %58, %cst_52 [1, 2] : vector<1x8x128xf32> to vector<1xf32>
      %60 = vector.shape_cast %59 : vector<1xf32> to vector<1x1x1xf32>
      %61 = vector.extract %60[0, 0, 0] : f32 from vector<1x1x1xf32>
      %62 = vector.broadcast %61 : f32 to vector<1x1xf32>
      %c0_53 = arith.constant 0 : index
      %c0_54 = arith.constant 0 : index
      %63 = vector.load %arg8[%c0_53, %c0_54] : memref<1x1xf32, #tpu.memory_space<vmem>>, vector<1x1xf32>
      tpu.vector_store %arg8[%c0_53, %c0_54], %62 {strides = array<i32>} : memref<1x1xf32, #tpu.memory_space<vmem>>, vector<1x1xf32>,
    } else {
    }
    return
  }
  func.func @transform_0(%arg0: i32) -> (i32, i32) {
    %c0_i32 = arith.constant 0 : i32
    %c0_i32_0 = arith.constant 0 : i32
    %c0_i32_1 = arith.constant 0 : i32
    return %c0_i32, %c0_i32_0 : i32, i32
  }
  func.func @transform_1(%arg0: i32) -> (i32, i32) {
    %c0_i32 = arith.constant 0 : i32
    %c0_i32_0 = arith.constant 0 : i32
    %c0_i32_1 = arith.constant 0 : i32
    return %c0_i32, %c0_i32_0 : i32, i32
  }
  func.func @transform_2(%arg0: i32) -> (i32, i32) {
    %c0_i32 = arith.constant 0 : i32
    %c0_i32_0 = arith.constant 0 : i32
    %c0_i32_1 = arith.constant 0 : i32
    return %c0_i32, %c0_i32_0 : i32, i32
  }
  func.func @transform_3(%arg0: i32) -> (i32, i32) {
    %c0_i32 = arith.constant 0 : i32
    %c0_i32_0 = arith.constant 0 : i32
    %c0_i32_1 = arith.constant 0 : i32
    return %c0_i32, %c0_i32_0 : i32, i32
  }
  func.func @transform_4(%arg0: i32) -> (i32, i32) {
    %c0_i32 = arith.constant 0 : i32
    %c0_i32_0 = arith.constant 0 : i32
    %c0_i32_1 = arith.constant 0 : i32
    return %c0_i32, %c0_i32_0 : i32, i32
  }
  func.func @transform_5(%arg0: i32) -> (i32, i32) {
    %c0_i32 = arith.constant 0 : i32
    %c0_i32_0 = arith.constant 0 : i32
    %c0_i32_1 = arith.constant 0 : i32
    return %c0_i32, %c0_i32_0 : i32, i32
  }
  func.func @transform_6(%arg0: i32) -> (i32, i32) {
    %c0_i32 = arith.constant 0 : i32
    %c0_i32_0 = arith.constant 0 : i32
    %c0_i32_1 = arith.constant 0 : i32
    return %c0_i32, %c0_i32_0 : i32, i32
  }
  func.func @transform_7(%arg0: i32) -> (i32, i32) {
    %c0_i32 = arith.constant 0 : i32
    %c0_i32_0 = arith.constant 0 : i32
    %c0_i32_1 = arith.constant 0 : i32
    return %c0_i32, %c0_i32_0 : i32, i32
  }
}

</mosaic_0001>

<llo_original>
// kernel: tpu_custom_call.1
$region0: #{tpu_custom_call.1}
  #allocation0 [shape = 'u32[]', space=smem, size = 0x4, offset = 0x4, fixed_abs, tag = 'smem constant byte address 0x4 - core index']
  #allocation1 [shape = 'u32[144,128]{1,0:T(1,128)}', space=vmem, size = 0x12000, scoped, tag = 'internal scratch']
  #allocation2 [shape = 'f32[8,128]{1,0:T(8,128)}', space=vmem, size = 0x1000, scoped, tag = 'scratch operand']
  #allocation3 [shape = 'f32[8,128]{1,0:T(8,128)}', space=vmem, size = 0x1000, scoped, tag = 'scratch operand']
  #allocation4 [shape = 'f32[8,128]{1,0:T(8,128)}', space=vmem, size = 0x1000, scoped, tag = 'scratch operand']
  %s0 = inlined_call_operand.hbm [shape: f32[16,128], index: 0, kind: input, shape index: {}]
  %s1 = inlined_call_operand.hbm [shape: f32[16,128], index: 1, kind: input, shape index: {}]
  %s2 = inlined_call_operand.hbm [shape: f32[8,128], index: 2, kind: input, shape index: {}]
  %s3 = inlined_call_operand.hbm [shape: f32[8,128], index: 3, kind: input, shape index: {}]
  %s4 = inlined_call_operand.hbm [shape: f32[8,128], index: 4, kind: input, shape index: {}]
  %s5 = inlined_call_operand.hbm [shape: f32[1,1], index: 5, kind: output, shape index: {0}]
  %s6 = inlined_call_operand.hbm [shape: f32[1,1], index: 6, kind: output, shape index: {1}]
  %s7 = inlined_call_operand.hbm [shape: f32[1,1], index: 7, kind: output, shape index: {2}]
  %8 = xla_tuple %s5, %s6, %s7
  %s9 = sld [smem:[#allocation0]]
  $region74: #{tpu_custom_call.1} parent=0
    _
  %s11 = ssub.s32 1, %s9
  %s12 = scalar_select 0, %s11, %s9
  $region1: #{tpu_custom_call.1} parent=0
    #allocation5 [shape = 'u8[8192]{0}', space=vmem, size = 0x2000, scoped, tag = 'input window, operand 0, single buffered']
    #allocation6 [shape = 's32[1]{0}', space=sflag, size = 0x4, scoped, tag = 'scoped memory for tpu_custom_call.1']
    #allocation7 [shape = 's32[1]{0}', space=sflag, size = 0x4, scoped, tag = 'scoped memory for tpu_custom_call.1']
    #allocation8 [shape = 'u8[8192]{0}', space=vmem, size = 0x2000, scoped, tag = 'input window, operand 1, single buffered']
    #allocation9 [shape = 's32[1]{0}', space=sflag, size = 0x4, scoped, tag = 'scoped memory for tpu_custom_call.1']
    #allocation10 [shape = 'u8[4096]{0}', space=vmem, size = 0x1000, scoped, tag = 'input window, operand 2, single buffered']
    #allocation11 [shape = 'u8[4096]{0}', space=vmem, size = 0x1000, scoped, tag = 'input window, operand 3, single buffered']
    #allocation12 [shape = 's32[1]{0}', space=sflag, size = 0x4, scoped, tag = 'scoped memory for tpu_custom_call.1']
    #allocation13 [shape = 'u8[4096]{0}', space=vmem, size = 0x1000, scoped, tag = 'input window, operand 4, single buffered']
    #allocation14 [shape = 'u8[512]{0}', space=vmem, size = 0x400, scoped, tag = 'output window, operand 0, single buffered']
    #allocation15 [shape = 'u8[512]{0}', space=vmem, size = 0x400, scoped, tag = 'output window, operand 1, single buffered']
    #allocation16 [shape = 's32[1]{0}', space=sflag, size = 0x4, scoped, tag = 'scoped memory for tpu_custom_call.1']
    #allocation17 [shape = 'u8[512]{0}', space=vmem, size = 0x400, scoped, tag = 'output window, operand 2, single buffered']
    %13 = vsyncpa [#allocation6], 0
    %14 = vsyncpa [#allocation9], 0
    %15 = vsyncpa [#allocation12], 0
    %16 = vsyncpa [#allocation7], 0
    %17 = vsyncpa [#allocation16], 0
    // Predicated region
    $region2: #{tpu_custom_call.1} parent=1 // pred_check
      _
    $region3: #{tpu_custom_call.1} parent=1 // pred_check_branch
      %19 = sbr.rel (0) target = $region5
    $region4: #{tpu_custom_call.1} parent=1 // pred_region
      %s21 = ssub.s32 256, 256
      %22 = vsyncadd [#allocation6], %s21
      %s23 = sshll.u32 [#allocation5], 4
      %s24 = int_to_ptr.vmem [resolvable:$true] %s23
      %29 = dma.hbm_to_vmem [thread:$0]  %s0, 256, %s24, [#allocation6], 128, 128, 8
    $region5: #{tpu_custom_call.1} parent=1 // pred_fallthru
      _
    // Predicated region
    $region6: #{tpu_custom_call.1} parent=1 // pred_check
      _
    $region7: #{tpu_custom_call.1} parent=1 // pred_check_branch
      %31 = sbr.rel (0) target = $region9
    $region8: #{tpu_custom_call.1} parent=1 // pred_region
      %s33 = ssub.s32 256, 256
      %34 = vsyncadd [#allocation9], %s33
      %s35 = sshll.u32 [#allocation8], 4
      %s36 = int_to_ptr.vmem [resolvable:$true] %s35
      %41 = dma.hbm_to_vmem [thread:$0]  %s1, 256, %s36, [#allocation9], 128, 128, 8
    $region9: #{tpu_custom_call.1} parent=1 // pred_fallthru
      _
    // Predicated region
    $region10: #{tpu_custom_call.1} parent=1 // pred_check
      _
    $region11: #{tpu_custom_call.1} parent=1 // pred_check_branch
      %43 = sbr.rel (0) target = $region13
    $region12: #{tpu_custom_call.1} parent=1 // pred_region
      %s45 = ssub.s32 128, 128
      %46 = vsyncadd [#allocation9], %s45
      %s48 = sshll.u32 [#allocation10], 4
      %s49 = int_to_ptr.vmem [resolvable:$true] %s48
      %51 = dma.hbm_to_vmem [thread:$0]  %s2, 128, %s49, [#allocation9]
    $region13: #{tpu_custom_call.1} parent=1 // pred_fallthru
      _
    // Predicated region
    $region14: #{tpu_custom_call.1} parent=1 // pred_check
      _
    $region15: #{tpu_custom_call.1} parent=1 // pred_check_branch
      %53 = sbr.rel (0) target = $region17
    $region16: #{tpu_custom_call.1} parent=1 // pred_region
      %s55 = ssub.s32 128, 128
      %56 = vsyncadd [#allocation12], %s55
      %s58 = sshll.u32 [#allocation11], 4
      %s59 = int_to_ptr.vmem [resolvable:$true] %s58
      %61 = dma.hbm_to_vmem [thread:$0]  %s3, 128, %s59, [#allocation12]
    $region17: #{tpu_custom_call.1} parent=1 // pred_fallthru
      _
    // Predicated region
    $region18: #{tpu_custom_call.1} parent=1 // pred_check
      _
    $region19: #{tpu_custom_call.1} parent=1 // pred_check_branch
      %63 = sbr.rel (0) target = $region21
    $region20: #{tpu_custom_call.1} parent=1 // pred_region
      %s65 = ssub.s32 128, 128
      %66 = vsyncadd [#allocation12], %s65
      %s68 = sshll.u32 [#allocation13], 4
      %s69 = int_to_ptr.vmem [resolvable:$true] %s68
      %71 = dma.hbm_to_vmem [thread:$0]  %s4, 128, %s69, [#allocation12]
    $region21: #{tpu_custom_call.1} parent=1 // pred_fallthru
      _
    // Predicated region
    $region22: #{tpu_custom_call.1} parent=1 // pred_check
      _
    $region23: #{tpu_custom_call.1} parent=1 // pred_check_branch
      %73 = sbr.rel (0) target = $region25
    $region24: #{tpu_custom_call.1} parent=1 // pred_region
      %74 = dma.done [#allocation6], 256
    $region25: #{tpu_custom_call.1} parent=1 // pred_fallthru
      _
    // Predicated region
    $region26: #{tpu_custom_call.1} parent=1 // pred_check
      _
    $region27: #{tpu_custom_call.1} parent=1 // pred_check_branch
      %76 = sbr.rel (0) target = $region29
    $region28: #{tpu_custom_call.1} parent=1 // pred_region
      %77 = dma.done [#allocation9], 256
    $region29: #{tpu_custom_call.1} parent=1 // pred_fallthru
      _
    // Predicated region
    $region30: #{tpu_custom_call.1} parent=1 // pred_check
      _
    $region31: #{tpu_custom_call.1} parent=1 // pred_check_branch
      %79 = sbr.rel (0) target = $region33
    $region32: #{tpu_custom_call.1} parent=1 // pred_region
      %80 = dma.done [#allocation9], 128
    $region33: #{tpu_custom_call.1} parent=1 // pred_fallthru
      _
    // Predicated region
    $region34: #{tpu_custom_call.1} parent=1 // pred_check
      _
    $region35: #{tpu_custom_call.1} parent=1 // pred_check_branch
      %82 = sbr.rel (0) target = $region37
    $region36: #{tpu_custom_call.1} parent=1 // pred_region
      %83 = dma.done [#allocation12], 128
    $region37: #{tpu_custom_call.1} parent=1 // pred_fallthru
      _
    // Predicated region
    $region38: #{tpu_custom_call.1} parent=1 // pred_check
      _
    $region39: #{tpu_custom_call.1} parent=1 // pred_check_branch
      %85 = sbr.rel (0) target = $region41
    $region40: #{tpu_custom_call.1} parent=1 // pred_region
      %86 = dma.done [#allocation12], 128
    $region41: #{tpu_custom_call.1} parent=1 // pred_fallthru
      _
    %p87 = scmp.eq.s32.totalorder 0, 0
    // Predicated region
    $region42: #{tpu_custom_call.1} parent=1 // pred_check
      %p88 = pneg %p87
    $region43: #{tpu_custom_call.1} parent=1 // pred_check_branch
      %90 = sbr.rel (%p88) target = $region45
    $region44: #{tpu_custom_call.1} parent=1 // pred_region
      %91 = vst [vmem:[#allocation2] sm:$0xff] 0.0
      %92 = vst [vmem:[#allocation3] sm:$0xff] 0.0
      %93 = vst [vmem:[#allocation4] sm:$0xff] 0.0
    $region45: #{tpu_custom_call.1} parent=1 // pred_fallthru
      _
    %v94 = vld [vmem:[#allocation5] sm:$0xff]
    %v95 = vld [vmem:[#allocation5 + $0x8] sm:$0xff]
    %v96 = vld [vmem:[#allocation8] sm:$0xff]
    %v97 = vld [vmem:[#allocation8 + $0x8] sm:$0xff]
    %v98 = vsub.f32 %v94, %v96
    %v99 = vsub.f32 %v95, %v97
    %v100 = vmul.f32 %v98, %v98
    %v101 = vmul.f32 %v99, %v99
    %v102 = vld [vmem:[#allocation2] sm:$0xff]
    %v103 = vadd.f32 %v100, %v101
    %v104 = vadd.f32 %v102, %v103
    %105 = vst [vmem:[#allocation2] sm:$0xff] %v104
    %v106 = vld [vmem:[#allocation10] sm:$0xff]
    %v107 = vld [vmem:[#allocation3] sm:$0xff]
    %v108 = vmul.f32 %v106, %v106
    %v109 = vadd.f32 %v107, %v108
    %110 = vst [vmem:[#allocation3] sm:$0xff] %v109
    %v111 = vld [vmem:[#allocation4] sm:$0xff]
    %v112 = vand.u32 2147483647, %v106
    %v113 = vadd.f32 %v111, %v112
    %114 = vst [vmem:[#allocation4] sm:$0xff] %v113
    %v115 = vld [vmem:[#allocation11] sm:$0xff]
    %v116 = vld [vmem:[#allocation3] sm:$0xff]
    %v117 = vmul.f32 %v115, %v115
    %v118 = vadd.f32 %v116, %v117
    %119 = vst [vmem:[#allocation3] sm:$0xff] %v118
    %v120 = vld [vmem:[#allocation4] sm:$0xff]
    %v121 = vand.u32 2147483647, %v115
    %v122 = vadd.f32 %v120, %v121
    %123 = vst [vmem:[#allocation4] sm:$0xff] %v122
    %v124 = vld [vmem:[#allocation13] sm:$0xff]
    %v125 = vld [vmem:[#allocation3] sm:$0xff]
    %v126 = vmul.f32 %v124, %v124
    %v127 = vadd.f32 %v125, %v126
    %128 = vst [vmem:[#allocation3] sm:$0xff] %v127
    %v129 = vld [vmem:[#allocation4] sm:$0xff]
    %v130 = vand.u32 2147483647, %v124
    %v131 = vadd.f32 %v129, %v130
    %132 = vst [vmem:[#allocation4] sm:$0xff] %v131
    // Predicated region
    $region46: #{tpu_custom_call.1} parent=1 // pred_check
      %p133 = pneg %p87
    $region47: #{tpu_custom_call.1} parent=1 // pred_check_branch
      %135 = sbr.rel (%p133) target = $region49
    $region48: #{tpu_custom_call.1} parent=1 // pred_region
      %v136 = vld [vmem:[#allocation2] sm:$0xff]
      %137 = vadd.xlane.f32.xlu0 %v136
      %v138 = vpop.xlane.xlu0 %137
      %v139 = vrot.slane %v138, 4
      %v140 = vadd.f32 %v138, %v139
      %v141 = vrot.slane %v140, 2
      %v142 = vadd.f32 %v140, %v141
      %v143 = vrot.slane %v142, 1
      %v144 = vadd.f32 %v142, %v143
      %s145 = vtos %v144
      %v146 = vstv %s145
      %vm147 = vcmask 0
      %148 = vst.msk [vmem:[#allocation14] sm:$0x1] %vm147, %v146
      %v149 = vld [vmem:[#allocation3] sm:$0xff]
      %150 = vadd.xlane.f32.xlu0 %v149
      %v151 = vpop.xlane.xlu0 %150
      %v152 = vrot.slane %v151, 4
      %v153 = vadd.f32 %v151, %v152
      %v154 = vrot.slane %v153, 2
      %v155 = vadd.f32 %v153, %v154
      %v156 = vrot.slane %v155, 1
      %v157 = vadd.f32 %v155, %v156
      %s158 = vtos %v157
      %v159 = vstv %s158
      %160 = vst.msk [vmem:[#allocation15] sm:$0x1] %vm147, %v159
      %v161 = vld [vmem:[#allocation4] sm:$0xff]
      %162 = vadd.xlane.f32.xlu0 %v161
      %v163 = vpop.xlane.xlu0 %162
      %v164 = vrot.slane %v163, 4
      %v165 = vadd.f32 %v163, %v164
      %v166 = vrot.slane %v165, 2
      %v167 = vadd.f32 %v165, %v166
      %v168 = vrot.slane %v167, 1
      %v169 = vadd.f32 %v167, %v168
      %s170 = vtos %v169
      %v171 = vstv %s170
      %172 = vst.msk [vmem:[#allocation17] sm:$0x1] %vm147, %v171
    $region49: #{tpu_custom_call.1} parent=1 // pred_fallthru
      _
    // Predicated region
    $region50: #{tpu_custom_call.1} parent=1 // pred_check
      _
    $region51: #{tpu_custom_call.1} parent=1 // pred_check_branch
      %174 = sbr.rel (0) target = $region53
    $region52: #{tpu_custom_call.1} parent=1 // pred_region
      %s176 = ssub.s32 16, 16
      %177 = vsyncadd [#allocation7], %s176
      %s179 = sshll.u32 [#allocation14], 4
      %s180 = int_to_ptr.vmem [resolvable:$true] %s179
      %182 = dma.vmem_to_hbm [thread:$0]  %s180, 16, %s5, [#allocation7]
    $region53: #{tpu_custom_call.1} parent=1 // pred_fallthru
      _
    // Predicated region
    $region54: #{tpu_custom_call.1} parent=1 // pred_check
      _
    $region55: #{tpu_custom_call.1} parent=1 // pred_check_branch
      %184 = sbr.rel (0) target = $region57
    $region56: #{tpu_custom_call.1} parent=1 // pred_region
      %s186 = ssub.s32 16, 16
      %187 = vsyncadd [#allocation16], %s186
      %s189 = sshll.u32 [#allocation15], 4
      %s190 = int_to_ptr.vmem [resolvable:$true] %s189
      %192 = dma.vmem_to_hbm [thread:$0]  %s190, 16, %s6, [#allocation16]
    $region57: #{tpu_custom_call.1} parent=1 // pred_fallthru
      _
    // Predicated region
    $region58: #{tpu_custom_call.1} parent=1 // pred_check
      _
    $region59: #{tpu_custom_call.1} parent=1 // pred_check_branch
      %194 = sbr.rel (0) target = $region61
    $region60: #{tpu_custom_call.1} parent=1 // pred_region
      %s196 = ssub.s32 16, 16
      %197 = vsyncadd [#allocation16], %s196
      %s199 = sshll.u32 [#allocation17], 4
      %s200 = int_to_ptr.vmem [resolvable:$true] %s199
      %202 = dma.vmem_to_hbm [thread:$0]  %s200, 16, %s7, [#allocation16]
    $region61: #{tpu_custom_call.1} parent=1 // pred_fallthru
      _
    // Predicated region
    $region62: #{tpu_custom_call.1} parent=1 // pred_check
      _
    $region63: #{tpu_custom_call.1} parent=1 // pred_check_branch
      %204 = sbr.rel (0) target = $region65
    $region64: #{tpu_custom_call.1} parent=1 // pred_region
      %205 = dma.done [#allocation7], 16
    $region65: #{tpu_custom_call.1} parent=1 // pred_fallthru
      _
    // Predicated region
    $region66: #{tpu_custom_call.1} parent=1 // pred_check
      _
    $region67: #{tpu_custom_call.1} parent=1 // pred_check_branch
      %207 = sbr.rel (0) target = $region69
    $region68: #{tpu_custom_call.1} parent=1 // pred_region
      %208 = dma.done [#allocation16], 16
    $region69: #{tpu_custom_call.1} parent=1 // pred_fallthru
      _
    // Predicated region
    $region70: #{tpu_custom_call.1} parent=1 // pred_check
      _
    $region71: #{tpu_custom_call.1} parent=1 // pred_check_branch
      %210 = sbr.rel (0) target = $region73
    $region72: #{tpu_custom_call.1} parent=1 // pred_region
      %211 = dma.done [#allocation16], 16
    $region73: #{tpu_custom_call.1} parent=1 // pred_fallthru
      _
    %212 = vsyncpa [#allocation6], 1
    %213 = vsyncpa [#allocation9], 1
    %214 = vsyncpa [#allocation12], 1
    %215 = vsyncpa [#allocation7], 1
    %216 = vsyncpa [#allocation16], 1

</llo_original>
